<compile_context>
chip_gen: v6e
topology: v6e:2x2x1
jax: 0.10.0
libtpu: 0.0.40
codegen_flags: <defaults>
</compile_context>

<pallas_src>
import jax
import jax.numpy as jnp
from jax.experimental import pallas as pl
from jax.experimental.pallas import tpu as pltpu


# ----------------------------------------------------------------------------
# Kernel A: pooled attention branch -> per-batch channel weight map.
# ----------------------------------------------------------------------------
def _weight_map_kernel(gl_ref, gh_ref, w1_ref, w2_ref, w3_ref, b_ref, wm_ref):
    """gl:(B,C_low) gh:(B,C_high) wK:(Cin,C_high) b:(3,C_high) -> wm:(B,C_high)."""
    biases = b_ref[...]                                        # (3, C_high)
    a = jnp.dot(gl_ref[...], w1_ref[...],
                preferred_element_type=jnp.float32) + biases[0:1]
    a = jnp.maximum(a, 0.0)                                    # conv1 + BN + ReLU
    c = jnp.dot(gh_ref[...], w2_ref[...],
                preferred_element_type=jnp.float32) + biases[1:2]
    c = jnp.maximum(c, 0.0)                                    # conv2 + BN + ReLU
    z = jnp.dot(a + c, w3_ref[...],
                preferred_element_type=jnp.float32) + biases[2:3]
    z = z - jnp.max(z, axis=-1, keepdims=True)                 # conv3 + softmax(C)
    e = jnp.exp(z)
    wm_ref[...] = e * pl.reciprocal(jnp.sum(e, axis=-1, keepdims=True),
                                    approx=True)


# ----------------------------------------------------------------------------
# Kernel B: streaming epilogue  relu(x_low @ w4 + b4) * wm + x_high.
# ----------------------------------------------------------------------------
def _apply_kernel(xl_ref, xh_ref, w4_ref, b4_ref, wm_ref, o_ref):
    """xl:(1,T,C_low) xh:(1,T,C_high) w4:(C_low,C_high) b4:(1,C_high)
       wm:(1,1,C_high) -> o:(1,T,C_high)."""
    y = jnp.dot(xl_ref[0], w4_ref[...], preferred_element_type=jnp.float32)
    y = jnp.maximum(y + b4_ref[...], 0.0)                      # conv4 + BN + ReLU
    out = y * wm_ref[0] + xh_ref[0].astype(jnp.float32)        # reweight + residual
    o_ref[0] = out.astype(o_ref.dtype)


def _pick_tile_hw(hw, c_low, c_high, compute_dtype, budget_bytes):
    """Largest multiple-of-8 HW tile whose double-buffered working set fits."""
    in_bytes = jnp.dtype(compute_dtype).itemsize
    # 2x-buffered xl + xh inputs (compute dtype) and f32 output per row.
    per_row = 2 * ((c_low + c_high) * in_bytes + c_high * 4)
    tile = budget_bytes // per_row
    if tile >= hw:
        return int(hw)
    tile = max(8, (tile // 8) * 8)
    return int(min(tile, hw))


def aam_block(x_low, x_high, params, *,
              compute_dtype=jnp.bfloat16,
              vmem_budget_bytes=16 * 1024 * 1024):
    """x_low: (B, HW, C_low), x_high: (B, HW, C_high) -> (B, HW, C_high)."""
    B, HW, C_low = x_low.shape
    _, _, C_high = x_high.shape
    (w1, b1), (w2, b2), (w3, b3), (w4, b4) = params

    # Cast the dominant HBM streams (and w4) to the compute dtype once.
    xl = x_low.astype(compute_dtype)
    xh = x_high.astype(compute_dtype)
    w4c = w4.astype(compute_dtype)

    # --- prologue: global average pooling (XLA streaming reduction, f32 acc) ---
    g_low = jnp.mean(xl, axis=1, dtype=jnp.float32)            # (B, C_low)
    g_high = jnp.mean(xh, axis=1, dtype=jnp.float32)           # (B, C_high)

    # Merge the three small biases into one (3, C_high) VMEM tile.
    b123 = jnp.concatenate([b1, b2, b3], axis=0)

    # --- kernel A: batched attention branch -> (B, C_high) weight map ---
    wm = pl.pallas_call(
        _weight_map_kernel,
        out_shape=jax.ShapeDtypeStruct((B, C_high), jnp.float32),
        grid_spec=pltpu.PrefetchScalarGridSpec(
            num_scalar_prefetch=0,
            grid=(1,),
            in_specs=[
                pl.BlockSpec((B, C_low), lambda i: (0, 0)),
                pl.BlockSpec((B, C_high), lambda i: (0, 0)),
                pl.BlockSpec((C_low, C_high), lambda i: (0, 0)),
                pl.BlockSpec((C_high, C_high), lambda i: (0, 0)),
                pl.BlockSpec((C_high, C_high), lambda i: (0, 0)),
                pl.BlockSpec((3, C_high), lambda i: (0, 0)),
            ],
            out_specs=pl.BlockSpec((B, C_high), lambda i: (0, 0)),
        ),
        compiler_params=pltpu.CompilerParams(
            dimension_semantics=("arbitrary",)),
    )(g_low, g_high, w1, w2, w3, b123)
    wm = wm.reshape(B, 1, C_high)                              # (B, 1, C_high)

    # --- kernel B: streaming conv4 + reweight + residual, tiled over (B, HW) ---
    tile_hw = _pick_tile_hw(HW, C_low, C_high, compute_dtype, vmem_budget_bytes)
    n_tiles = pl.cdiv(HW, tile_hw)

    out = pl.pallas_call(
        _apply_kernel,
        out_shape=jax.ShapeDtypeStruct((B, HW, C_high), x_high.dtype),
        grid_spec=pltpu.PrefetchScalarGridSpec(
            num_scalar_prefetch=0,
            grid=(B, n_tiles),
            in_specs=[
                pl.BlockSpec((1, tile_hw, C_low), lambda b, t: (b, t, 0)),
                pl.BlockSpec((1, tile_hw, C_high), lambda b, t: (b, t, 0)),
                pl.BlockSpec((C_low, C_high), lambda b, t: (0, 0)),
                pl.BlockSpec((1, C_high), lambda b, t: (0, 0)),
                pl.BlockSpec((1, 1, C_high), lambda b, t: (b, 0, 0)),
            ],
            out_specs=pl.BlockSpec((1, tile_hw, C_high), lambda b, t: (b, t, 0)),
        ),
        compiler_params=pltpu.CompilerParams(
            dimension_semantics=("parallel", "parallel"),
            vmem_limit_bytes=48 * 1024 * 1024,
        ),
    )(xl, xh, w4c, b4, wm)
    return out


# ----------------------------------------------------------------------------
# Deterministic parameter construction (synthetic weights, BN folded).
# ----------------------------------------------------------------------------
def _make_conv_bn_params(key, c_in, c_out, with_bn=True, eps=1e-5):
    ks = jax.random.split(key, 6)
    w = jax.random.normal(ks[0], (c_in, c_out), jnp.float32) * 0.1
    b = jax.random.normal(ks[1], (1, c_out), jnp.float32) * 0.05
    if not with_bn:
        return w, b
    gamma = 1.0 + 0.1 * jax.random.normal(ks[2], (c_out,), jnp.float32)
    beta = 0.05 * jax.random.normal(ks[3], (c_out,), jnp.float32)
    mean = 0.02 * jax.random.normal(ks[4], (c_out,), jnp.float32)
    var = jnp.abs(1.0 + 0.1 * jax.random.normal(ks[5], (c_out,), jnp.float32))
    scale = gamma / jnp.sqrt(var + eps)
    shift = beta - mean * scale
    w_eff = w * scale[None, :]
    b_eff = b * scale[None, :] + shift[None, :]
    return w_eff, b_eff


def _reference(x_low, x_high, params):
    """Pure-JAX f32 reference of the same folded math (NHWC-flat layout)."""
    (w1, b1), (w2, b2), (w3, b3), (w4, b4) = params
    g_low = jnp.mean(x_low, axis=1, keepdims=True)             # (B,1,C_low)
    g_high = jnp.mean(x_high, axis=1, keepdims=True)           # (B,1,C_high)
    a = jax.nn.relu(jnp.einsum('bsc,cd->bsd', g_low, w1) + b1)
    b = jax.nn.relu(jnp.einsum('bsc,cd->bsd', g_high, w2) + b2)
    wm = jax.nn.softmax(jnp.einsum('bsc,cd->bsd', a + b, w3) + b3, axis=-1)
    c4 = jax.nn.relu(jnp.einsum('bsc,cd->bsd', x_low, w4) + b4)
    return c4 * wm + x_high


if __name__ == "__main__":
    B, C_low, C_high, H, W = 2, 4, 8, 16, 16
    HW = H * W

    key = jax.random.PRNGKey(0)
    k_xl, k_xh, k1, k2, k3, k4 = jax.random.split(key, 6)

    # PyTorch inputs would be NCHW (B, C, H, W); we build them directly in the
    # kernel's (B, H*W, C) layout.
    x_low = jax.random.normal(k_xl, (B, HW, C_low), jnp.float32)
    x_high = jax.random.normal(k_xh, (B, HW, C_high), jnp.float32)

    params = (
        _make_conv_bn_params(k1, C_low, C_high, with_bn=True),    # conv1
        _make_conv_bn_params(k2, C_high, C_high, with_bn=True),   # conv2
        _make_conv_bn_params(k3, C_high, C_high, with_bn=False),  # conv3
        _make_conv_bn_params(k4, C_low, C_high, with_bn=True),    # conv4
    )

    ref = _reference(x_low, x_high, params)

    # f32 path: tight check (only approx-reciprocal softmax differs).
    out_f32 = jax.block_until_ready(
        aam_block(x_low, x_high, params, compute_dtype=jnp.float32))
    assert out_f32.shape == (B, HW, C_high)
    assert jnp.allclose(out_f32, ref, atol=5e-3, rtol=5e-3), "f32 mismatch"

    # bf16 path (default, bandwidth-optimized): loose check.
    out_bf16 = jax.block_until_ready(aam_block(x_low, x_high, params))
    assert out_bf16.shape == (B, HW, C_high)
    assert jnp.allclose(out_bf16, ref, atol=6e-2, rtol=6e-2), "bf16 mismatch"

    print("KERNEL_OK")
</pallas_src>

<mosaic_0001>
module attributes {stable_mosaic.version = 11 : i64} {
  func.func @_weight_map_kernel(%arg0: i32, %arg1: memref<2x4xf32, #tpu.memory_space<vmem>>, %arg2: memref<2x8xf32, #tpu.memory_space<vmem>>, %arg3: memref<4x8xf32, #tpu.memory_space<vmem>>, %arg4: memref<8x8xf32, #tpu.memory_space<vmem>>, %arg5: memref<8x8xf32, #tpu.memory_space<vmem>>, %arg6: memref<3x8xf32, #tpu.memory_space<vmem>>, %arg7: memref<2x8xf32, #tpu.memory_space<vmem>>) attributes {dimension_semantics = [#tpu.dimension_semantics<arbitrary>], iteration_bounds = array<i64: 1>, scalar_prefetch = 0 : i64, scratch_operands = 0 : i64, tpu.core_type = #tpu.core_type<tc>, window_params = [{pipeline_mode = #tpu.pipeline_mode<synchronous>, transform_indices = @transform_0, window_bounds = array<i64: 2, 4>}, {pipeline_mode = #tpu.pipeline_mode<synchronous>, transform_indices = @transform_1, window_bounds = array<i64: 2, 8>}, {pipeline_mode = #tpu.pipeline_mode<synchronous>, transform_indices = @transform_2, window_bounds = array<i64: 4, 8>}, {pipeline_mode = #tpu.pipeline_mode<synchronous>, transform_indices = @transform_3, window_bounds = array<i64: 8, 8>}, {pipeline_mode = #tpu.pipeline_mode<synchronous>, transform_indices = @transform_4, window_bounds = array<i64: 8, 8>}, {pipeline_mode = #tpu.pipeline_mode<synchronous>, transform_indices = @transform_5, window_bounds = array<i64: 3, 8>}, {pipeline_mode = #tpu.pipeline_mode<synchronous>, transform_indices = @transform_6, window_bounds = array<i64: 2, 8>}]} {
    %c0 = arith.constant 0 : index
    %c0_0 = arith.constant 0 : index
    %0 = vector.load %arg6[%c0, %c0_0] : memref<3x8xf32, #tpu.memory_space<vmem>>, vector<3x8xf32>
    %c0_1 = arith.constant 0 : index
    %c0_2 = arith.constant 0 : index
    %1 = vector.load %arg1[%c0_1, %c0_2] : memref<2x4xf32, #tpu.memory_space<vmem>>, vector<2x4xf32>
    %c0_3 = arith.constant 0 : index
    %c0_4 = arith.constant 0 : index
    %2 = vector.load %arg3[%c0_3, %c0_4] : memref<4x8xf32, #tpu.memory_space<vmem>>, vector<4x8xf32>
    %cst = arith.constant dense<0.000000e+00> : vector<2x8xf32>
    %3 = tpu.matmul %1, %2, %cst {dimension_numbers = #tpu.dot_dimension_numbers<[1], [0], [0], [1], [0, 0, 1, 1], [], []>} : vector<2x4xf32>, vector<4x8xf32>, vector<2x8xf32> -> vector<2x8xf32>
    %4 = vector.extract_strided_slice %0 {offsets = [0, 0], sizes = [1, 8], strides = [1, 1]} : vector<3x8xf32> to vector<1x8xf32>
    %5 = vector.broadcast %4 : vector<1x8xf32> to vector<2x8xf32>
    %6 = arith.addf %3, %5 : vector<2x8xf32>
    %cst_5 = arith.constant 0.000000e+00 : f32
    %7 = vector.broadcast %cst_5 : f32 to vector<2x8xf32>
    %8 = arith.maximumf %6, %7 : vector<2x8xf32>
    %c0_6 = arith.constant 0 : index
    %c0_7 = arith.constant 0 : index
    %9 = vector.load %arg2[%c0_6, %c0_7] : memref<2x8xf32, #tpu.memory_space<vmem>>, vector<2x8xf32>
    %c0_8 = arith.constant 0 : index
    %c0_9 = arith.constant 0 : index
    %10 = vector.load %arg4[%c0_8, %c0_9] : memref<8x8xf32, #tpu.memory_space<vmem>>, vector<8x8xf32>
    %cst_10 = arith.constant dense<0.000000e+00> : vector<2x8xf32>
    %11 = tpu.matmul %9, %10, %cst_10 {dimension_numbers = #tpu.dot_dimension_numbers<[1], [0], [0], [1], [0, 0, 1, 1], [], []>} : vector<2x8xf32>, vector<8x8xf32>, vector<2x8xf32> -> vector<2x8xf32>
    %12 = vector.extract_strided_slice %0 {offsets = [1, 0], sizes = [1, 8], strides = [1, 1]} : vector<3x8xf32> to vector<1x8xf32>
    %13 = vector.broadcast %12 : vector<1x8xf32> to vector<2x8xf32>
    %14 = arith.addf %11, %13 : vector<2x8xf32>
    %cst_11 = arith.constant 0.000000e+00 : f32
    %15 = vector.broadcast %cst_11 : f32 to vector<2x8xf32>
    %16 = arith.maximumf %14, %15 : vector<2x8xf32>
    %17 = arith.addf %8, %16 : vector<2x8xf32>
    %c0_12 = arith.constant 0 : index
    %c0_13 = arith.constant 0 : index
    %18 = vector.load %arg5[%c0_12, %c0_13] : memref<8x8xf32, #tpu.memory_space<vmem>>, vector<8x8xf32>
    %cst_14 = arith.constant dense<0.000000e+00> : vector<2x8xf32>
    %19 = tpu.matmul %17, %18, %cst_14 {dimension_numbers = #tpu.dot_dimension_numbers<[1], [0], [0], [1], [0, 0, 1, 1], [], []>} : vector<2x8xf32>, vector<8x8xf32>, vector<2x8xf32> -> vector<2x8xf32>
    %20 = vector.extract_strided_slice %0 {offsets = [2, 0], sizes = [1, 8], strides = [1, 1]} : vector<3x8xf32> to vector<1x8xf32>
    %21 = vector.broadcast %20 : vector<1x8xf32> to vector<2x8xf32>
    %22 = arith.addf %19, %21 : vector<2x8xf32>
    %cst_15 = arith.constant dense<0xFF800000> : vector<2xf32>
    %23 = vector.multi_reduction <maximumf>, %22, %cst_15 [1] : vector<2x8xf32> to vector<2xf32>
    %24 = vector.shape_cast %23 : vector<2xf32> to vector<2x1xf32>
    %25 = vector.broadcast %24 : vector<2x1xf32> to vector<2x8xf32>
    %26 = arith.subf %22, %25 : vector<2x8xf32>
    %27 = math.exp %26 : vector<2x8xf32>
    %cst_16 = arith.constant dense<0.000000e+00> : vector<2xf32>
    %28 = vector.multi_reduction <add>, %27, %cst_16 [1] : vector<2x8xf32> to vector<2xf32>
    %29 = vector.shape_cast %28 : vector<2xf32> to vector<2x1xf32>
    %30 = tpu.reciprocal %29 {approx = true} : vector<2x1xf32> -> vector<2x1xf32>
    %31 = vector.broadcast %30 : vector<2x1xf32> to vector<2x8xf32>
    %32 = arith.mulf %27, %31 : vector<2x8xf32>
    %c0_17 = arith.constant 0 : index
    %c0_18 = arith.constant 0 : index
    %33 = vector.load %arg7[%c0_17, %c0_18] : memref<2x8xf32, #tpu.memory_space<vmem>>, vector<2x8xf32>
    tpu.vector_store %arg7[%c0_17, %c0_18], %32 {strides = array<i32>} : memref<2x8xf32, #tpu.memory_space<vmem>>, vector<2x8xf32>,
    return
  }
  func.func @transform_0(%arg0: i32) -> (i32, i32) {
    %c0_i32 = arith.constant 0 : i32
    %c0_i32_0 = arith.constant 0 : i32
    %c0_i32_1 = arith.constant 0 : i32
    return %c0_i32, %c0_i32_0 : i32, i32
  }
  func.func @transform_1(%arg0: i32) -> (i32, i32) {
    %c0_i32 = arith.constant 0 : i32
    %c0_i32_0 = arith.constant 0 : i32
    %c0_i32_1 = arith.constant 0 : i32
    return %c0_i32, %c0_i32_0 : i32, i32
  }
  func.func @transform_2(%arg0: i32) -> (i32, i32) {
    %c0_i32 = arith.constant 0 : i32
    %c0_i32_0 = arith.constant 0 : i32
    %c0_i32_1 = arith.constant 0 : i32
    return %c0_i32, %c0_i32_0 : i32, i32
  }
  func.func @transform_3(%arg0: i32) -> (i32, i32) {
    %c0_i32 = arith.constant 0 : i32
    %c0_i32_0 = arith.constant 0 : i32
    %c0_i32_1 = arith.constant 0 : i32
    return %c0_i32, %c0_i32_0 : i32, i32
  }
  func.func @transform_4(%arg0: i32) -> (i32, i32) {
    %c0_i32 = arith.constant 0 : i32
    %c0_i32_0 = arith.constant 0 : i32
    %c0_i32_1 = arith.constant 0 : i32
    return %c0_i32, %c0_i32_0 : i32, i32
  }
  func.func @transform_5(%arg0: i32) -> (i32, i32) {
    %c0_i32 = arith.constant 0 : i32
    %c0_i32_0 = arith.constant 0 : i32
    %c0_i32_1 = arith.constant 0 : i32
    return %c0_i32, %c0_i32_0 : i32, i32
  }
  func.func @transform_6(%arg0: i32) -> (i32, i32) {
    %c0_i32 = arith.constant 0 : i32
    %c0_i32_0 = arith.constant 0 : i32
    %c0_i32_1 = arith.constant 0 : i32
    return %c0_i32, %c0_i32_0 : i32, i32
  }
}

</mosaic_0001>

<llo_original>
// kernel: tpu_custom_call.1
$region0: #{tpu_custom_call.1}
  #allocation0 [shape = 'u32[]', space=smem, size = 0x4, offset = 0x4, fixed_abs, tag = 'smem constant byte address 0x4 - core index']
  #allocation1 [shape = 'u32[144,128]{1,0:T(1,128)}', space=vmem, size = 0x12000, scoped, tag = 'internal scratch']
  %s0 = inlined_call_operand.hbm [shape: f32[2,4], index: 0, kind: input, shape index: {}]
  %s1 = inlined_call_operand.hbm [shape: f32[2,8], index: 1, kind: input, shape index: {}]
  %s2 = inlined_call_operand.hbm [shape: f32[4,8], index: 2, kind: input, shape index: {}]
  %s3 = inlined_call_operand.hbm [shape: f32[8,8], index: 3, kind: input, shape index: {}]
  %s4 = inlined_call_operand.hbm [shape: f32[8,8], index: 4, kind: input, shape index: {}]
  %s5 = inlined_call_operand.vmem [shape: f32[3,8], index: 5, kind: input, shape index: {}]
  %s6 = inlined_call_operand.hbm [shape: f32[2,8], index: 6, kind: output, shape index: {}]
  %s7 = sld [smem:[#allocation0]]
  $region54: #{tpu_custom_call.1} parent=0
    _
  %s9 = ssub.s32 1, %s7
  %s10 = scalar_select 0, %s9, %s7
  $region1: #{tpu_custom_call.1} parent=0
    #allocation2 [shape = 'u8[1024]{0}', space=vmem, size = 0x400, scoped, tag = 'input window, operand 0, single buffered']
    #allocation3 [shape = 's32[1]{0}', space=sflag, size = 0x4, scoped, tag = 'scoped memory for tpu_custom_call.1']
    #allocation4 [shape = 's32[1]{0}', space=sflag, size = 0x4, scoped, tag = 'scoped memory for tpu_custom_call.1']
    #allocation5 [shape = 'u8[1024]{0}', space=vmem, size = 0x400, scoped, tag = 'input window, operand 1, single buffered']
    #allocation6 [shape = 's32[1]{0}', space=sflag, size = 0x4, scoped, tag = 'scoped memory for tpu_custom_call.1']
    #allocation7 [shape = 'u8[2048]{0}', space=vmem, size = 0x800, scoped, tag = 'input window, operand 2, single buffered']
    #allocation8 [shape = 'u8[4096]{0}', space=vmem, size = 0x1000, scoped, tag = 'input window, operand 3, single buffered']
    #allocation9 [shape = 's32[1]{0}', space=sflag, size = 0x4, scoped, tag = 'scoped memory for tpu_custom_call.1']
    #allocation10 [shape = 'u8[4096]{0}', space=vmem, size = 0x1000, scoped, tag = 'input window, operand 4, single buffered']
    #allocation11 [shape = 'u8[1024]{0}', space=vmem, size = 0x400, scoped, tag = 'output window, operand 0, single buffered']
    %11 = vsyncpa [#allocation3], 0
    %12 = vsyncpa [#allocation6], 0
    %13 = vsyncpa [#allocation9], 0
    %14 = vsyncpa [#allocation4], 0
    // Predicated region
    $region2: #{tpu_custom_call.1} parent=1 // pred_check
      _
    $region3: #{tpu_custom_call.1} parent=1 // pred_check_branch
      %16 = sbr.rel (0) target = $region5
    $region4: #{tpu_custom_call.1} parent=1 // pred_region
      %s18 = ssub.s32 32, 32
      %19 = vsyncadd [#allocation3], %s18
      %s21 = sshll.u32 [#allocation2], 4
      %s22 = int_to_ptr.vmem [resolvable:$true] %s21
      %24 = dma.hbm_to_vmem [thread:$0]  %s0, 32, %s22, [#allocation3]
    $region5: #{tpu_custom_call.1} parent=1 // pred_fallthru
      _
    // Predicated region
    $region6: #{tpu_custom_call.1} parent=1 // pred_check
      _
    $region7: #{tpu_custom_call.1} parent=1 // pred_check_branch
      %26 = sbr.rel (0) target = $region9
    $region8: #{tpu_custom_call.1} parent=1 // pred_region
      %s28 = ssub.s32 32, 32
      %29 = vsyncadd [#allocation6], %s28
      %s31 = sshll.u32 [#allocation5], 4
      %s32 = int_to_ptr.vmem [resolvable:$true] %s31
      %34 = dma.hbm_to_vmem [thread:$0]  %s1, 32, %s32, [#allocation6]
    $region9: #{tpu_custom_call.1} parent=1 // pred_fallthru
      _
    // Predicated region
    $region10: #{tpu_custom_call.1} parent=1 // pred_check
      _
    $region11: #{tpu_custom_call.1} parent=1 // pred_check_branch
      %36 = sbr.rel (0) target = $region13
    $region12: #{tpu_custom_call.1} parent=1 // pred_region
      %s38 = ssub.s32 64, 64
      %39 = vsyncadd [#allocation6], %s38
      %s41 = sshll.u32 [#allocation7], 4
      %s42 = int_to_ptr.vmem [resolvable:$true] %s41
      %44 = dma.hbm_to_vmem [thread:$0]  %s2, 64, %s42, [#allocation6]
    $region13: #{tpu_custom_call.1} parent=1 // pred_fallthru
      _
    // Predicated region
    $region14: #{tpu_custom_call.1} parent=1 // pred_check
      _
    $region15: #{tpu_custom_call.1} parent=1 // pred_check_branch
      %46 = sbr.rel (0) target = $region17
    $region16: #{tpu_custom_call.1} parent=1 // pred_region
      %s48 = ssub.s32 128, 128
      %49 = vsyncadd [#allocation9], %s48
      %s51 = sshll.u32 [#allocation8], 4
      %s52 = int_to_ptr.vmem [resolvable:$true] %s51
      %54 = dma.hbm_to_vmem [thread:$0]  %s3, 128, %s52, [#allocation9]
    $region17: #{tpu_custom_call.1} parent=1 // pred_fallthru
      _
    // Predicated region
    $region18: #{tpu_custom_call.1} parent=1 // pred_check
      _
    $region19: #{tpu_custom_call.1} parent=1 // pred_check_branch
      %56 = sbr.rel (0) target = $region21
    $region20: #{tpu_custom_call.1} parent=1 // pred_region
      %s58 = ssub.s32 128, 128
      %59 = vsyncadd [#allocation9], %s58
      %s61 = sshll.u32 [#allocation10], 4
      %s62 = int_to_ptr.vmem [resolvable:$true] %s61
      %64 = dma.hbm_to_vmem [thread:$0]  %s4, 128, %s62, [#allocation9]
    $region21: #{tpu_custom_call.1} parent=1 // pred_fallthru
      _
    // Predicated region
    $region22: #{tpu_custom_call.1} parent=1 // pred_check
      _
    $region23: #{tpu_custom_call.1} parent=1 // pred_check_branch
      %66 = sbr.rel (0) target = $region25
    $region24: #{tpu_custom_call.1} parent=1 // pred_region
      _
    $region25: #{tpu_custom_call.1} parent=1 // pred_fallthru
      _
    // Predicated region
    $region26: #{tpu_custom_call.1} parent=1 // pred_check
      _
    $region27: #{tpu_custom_call.1} parent=1 // pred_check_branch
      %68 = sbr.rel (0) target = $region29
    $region28: #{tpu_custom_call.1} parent=1 // pred_region
      %69 = dma.done [#allocation3], 32
    $region29: #{tpu_custom_call.1} parent=1 // pred_fallthru
      _
    // Predicated region
    $region30: #{tpu_custom_call.1} parent=1 // pred_check
      _
    $region31: #{tpu_custom_call.1} parent=1 // pred_check_branch
      %71 = sbr.rel (0) target = $region33
    $region32: #{tpu_custom_call.1} parent=1 // pred_region
      %72 = dma.done [#allocation6], 32
    $region33: #{tpu_custom_call.1} parent=1 // pred_fallthru
      _
    // Predicated region
    $region34: #{tpu_custom_call.1} parent=1 // pred_check
      _
    $region35: #{tpu_custom_call.1} parent=1 // pred_check_branch
      %74 = sbr.rel (0) target = $region37
    $region36: #{tpu_custom_call.1} parent=1 // pred_region
      %75 = dma.done [#allocation6], 64
    $region37: #{tpu_custom_call.1} parent=1 // pred_fallthru
      _
    // Predicated region
    $region38: #{tpu_custom_call.1} parent=1 // pred_check
      _
    $region39: #{tpu_custom_call.1} parent=1 // pred_check_branch
      %77 = sbr.rel (0) target = $region41
    $region40: #{tpu_custom_call.1} parent=1 // pred_region
      %78 = dma.done [#allocation9], 128
    $region41: #{tpu_custom_call.1} parent=1 // pred_fallthru
      _
    // Predicated region
    $region42: #{tpu_custom_call.1} parent=1 // pred_check
      _
    $region43: #{tpu_custom_call.1} parent=1 // pred_check_branch
      %80 = sbr.rel (0) target = $region45
    $region44: #{tpu_custom_call.1} parent=1 // pred_region
      %81 = dma.done [#allocation9], 128
    $region45: #{tpu_custom_call.1} parent=1 // pred_fallthru
      _
    %v82 = vld [vmem:[%s5] sm:$0x7]
    %v83 = vld [vmem:[#allocation2] sm:$0x3]
    %v84 = vld [vmem:[#allocation7] sm:$0xf]
    %v85 = vlaneseq
    %v86 = vshrl.u32 %v85, 7
    %v87 = vsub.s32 0, %v86
    %v88 = vrot.slane %v82, %v87
    %vm89 = vcmask 31744
    %v91 = vsel %vm89, %v83, 0
    %vm93 = vcmask 1043456
    %v95 = vsel %vm93, %v84, 0
    %97 = vmatprep.subr.mxu0 0.0
    %98 = vmatpush1.msra.mxu0 0.0
    %99 = vmatprep.subr.mxu0 0.0
    %100 = vmatpush1.msra.mxu0 0.0
    %101 = vmatprep.subr.mxu0 0.0
    %102 = vmatpush1.msra.mxu0 0.0
    %103 = vmatprep.subr.mxu0 0.0
    %104 = vmatpush1.msra.mxu0 0.0
    %105 = vmatprep.subr.mxu0 0.0
    %106 = vmatpush1.msra.mxu0 0.0
    %107 = vmatprep.subr.mxu0 0.0
    %108 = vmatpush1.msra.mxu0 0.0
    %109 = vmatprep.subr.mxu0 0.0
    %110 = vmatpush1.msra.mxu0 0.0
    %111 = vmatprep.subr.mxu0 0.0
    %112 = vmatpush1.msra.mxu0 0.0
    %113 = vmatprep.subr.mxu0 0.0
    %114 = vmatpush1.msra.mxu0 0.0
    %115 = vmatprep.subr.mxu0 0.0
    %116 = vmatpush1.msra.mxu0 0.0
    %117 = vmatprep.subr.mxu0 0.0
    %118 = vmatpush1.msra.mxu0 0.0
    %119 = vmatprep.subr.mxu0 0.0
    %120 = vmatpush1.msra.mxu0 0.0
    %121 = vmatprep.subr.mxu0 0.0
    %122 = vmatpush1.msra.mxu0 0.0
    %123 = vmatprep.subr.mxu0 0.0
    %124 = vmatpush1.msra.mxu0 0.0
    %125 = vmatprep.subr.mxu0 0.0
    %126 = vmatpush1.msra.mxu0 0.0
    %127 = vmatprep.subr.mxu0 0.0
    %128 = vmatpush1.msra.mxu0 %v95
    %129 = vmatprep.subr.mxu0 0.0
    %130 = vmatpush2.msra.mxu0 0.0
    %131 = vmatprep.subr.mxu0 0.0
    %132 = vmatpush2.msra.mxu0 0.0
    %133 = vmatprep.subr.mxu0 0.0
    %134 = vmatpush2.msra.mxu0 0.0
    %135 = vmatprep.subr.mxu0 0.0
    %136 = vmatpush2.msra.mxu0 0.0
    %137 = vmatprep.subr.mxu0 0.0
    %138 = vmatpush2.msra.mxu0 0.0
    %139 = vmatprep.subr.mxu0 0.0
    %140 = vmatpush2.msra.mxu0 0.0
    %141 = vmatprep.subr.mxu0 0.0
    %142 = vmatpush2.msra.mxu0 0.0
    %143 = vmatprep.subr.mxu0 0.0
    %144 = vmatpush2.msra.mxu0 0.0
    %145 = vmatprep.subr.mxu0 0.0
    %146 = vmatpush2.msra.mxu0 0.0
    %147 = vmatprep.subr.mxu0 0.0
    %148 = vmatpush2.msra.mxu0 0.0
    %149 = vmatprep.subr.mxu0 0.0
    %150 = vmatpush2.msra.mxu0 0.0
    %151 = vmatprep.subr.mxu0 0.0
    %152 = vmatpush2.msra.mxu0 0.0
    %153 = vmatprep.subr.mxu0 0.0
    %154 = vmatpush2.msra.mxu0 0.0
    %155 = vmatprep.subr.mxu0 0.0
    %156 = vmatpush2.msra.mxu0 0.0
    %157 = vmatprep.subr.mxu0 0.0
    %158 = vmatpush2.msra.mxu0 0.0
    %159 = vmatprep.subr.mxu0 0.0
    %160 = vmatpush2.msra.mxu0 0.0
    %161 = vmatprep.mubr.f32.mxu0 0.0
    %162 = vmatmul.mubr.f32.gmra.mxu0 %v91
    %v163 = vpop.f32.mrf.mxu0
    %v164 = vadd.f32 %v88, %v163
    %v165 = vpop.f32.mrf.mxu0
    %166 = vdwg.mxu0
    %v167 = vmax.f32 %v164, 0.0
    %v168 = vld [vmem:[#allocation5] sm:$0x3]
    %v169 = vld [vmem:[#allocation8] sm:$0xff]
    %v170 = vlaneseq
    %v171 = vshrl.u32 %v170, 7
    %v172 = vsub.s32 1, %v171
    %v173 = vrot.slane %v82, %v172
    %vm174 = vcmask 64512
    %v176 = vsel %vm174, %v168, 0
    %178 = vmatprep.subr.mxu0 0.0
    %179 = vmatpush1.msra.mxu0 0.0
    %180 = vmatprep.subr.mxu0 0.0
    %181 = vmatpush1.msra.mxu0 0.0
    %182 = vmatprep.subr.mxu0 0.0
    %183 = vmatpush1.msra.mxu0 0.0
    %184 = vmatprep.subr.mxu0 0.0
    %185 = vmatpush1.msra.mxu0 0.0
    %186 = vmatprep.subr.mxu0 0.0
    %187 = vmatpush1.msra.mxu0 0.0
    %188 = vmatprep.subr.mxu0 0.0
    %189 = vmatpush1.msra.mxu0 0.0
    %190 = vmatprep.subr.mxu0 0.0
    %191 = vmatpush1.msra.mxu0 0.0
    %192 = vmatprep.subr.mxu0 0.0
    %193 = vmatpush1.msra.mxu0 0.0
    %194 = vmatprep.subr.mxu0 0.0
    %195 = vmatpush1.msra.mxu0 0.0
    %196 = vmatprep.subr.mxu0 0.0
    %197 = vmatpush1.msra.mxu0 0.0
    %198 = vmatprep.subr.mxu0 0.0
    %199 = vmatpush1.msra.mxu0 0.0
    %200 = vmatprep.subr.mxu0 0.0
    %201 = vmatpush1.msra.mxu0 0.0
    %202 = vmatprep.subr.mxu0 0.0
    %203 = vmatpush1.msra.mxu0 0.0
    %204 = vmatprep.subr.mxu0 0.0
    %205 = vmatpush1.msra.mxu0 0.0
    %206 = vmatprep.subr.mxu0 0.0
    %207 = vmatpush1.msra.mxu0 0.0
    %208 = vmatprep.subr.mxu0 0.0
    %209 = vmatpush1.msra.mxu0 %v169
    %210 = vmatprep.subr.mxu0 0.0
    %211 = vmatpush2.msra.mxu0 0.0
    %212 = vmatprep.subr.mxu0 0.0
    %213 = vmatpush2.msra.mxu0 0.0
    %214 = vmatprep.subr.mxu0 0.0
    %215 = vmatpush2.msra.mxu0 0.0
    %216 = vmatprep.subr.mxu0 0.0
    %217 = vmatpush2.msra.mxu0 0.0
    %218 = vmatprep.subr.mxu0 0.0
    %219 = vmatpush2.msra.mxu0 0.0
    %220 = vmatprep.subr.mxu0 0.0
    %221 = vmatpush2.msra.mxu0 0.0
    %222 = vmatprep.subr.mxu0 0.0
    %223 = vmatpush2.msra.mxu0 0.0
    %224 = vmatprep.subr.mxu0 0.0
    %225 = vmatpush2.msra.mxu0 0.0
    %226 = vmatprep.subr.mxu0 0.0
    %227 = vmatpush2.msra.mxu0 0.0
    %228 = vmatprep.subr.mxu0 0.0
    %229 = vmatpush2.msra.mxu0 0.0
    %230 = vmatprep.subr.mxu0 0.0
    %231 = vmatpush2.msra.mxu0 0.0
    %232 = vmatprep.subr.mxu0 0.0
    %233 = vmatpush2.msra.mxu0 0.0
    %234 = vmatprep.subr.mxu0 0.0
    %235 = vmatpush2.msra.mxu0 0.0
    %236 = vmatprep.subr.mxu0 0.0
    %237 = vmatpush2.msra.mxu0 0.0
    %238 = vmatprep.subr.mxu0 0.0
    %239 = vmatpush2.msra.mxu0 0.0
    %240 = vmatprep.subr.mxu0 0.0
    %241 = vmatpush2.msra.mxu0 0.0
    %242 = vmatprep.mubr.f32.mxu0 0.0
    %243 = vmatmul.mubr.f32.gmra.mxu0 %v176
    %v244 = vpop.f32.mrf.mxu0
    %v245 = vadd.f32 %v173, %v244
    %v246 = vpop.f32.mrf.mxu0
    %247 = vdwg.mxu0
    %v248 = vmax.f32 %v245, 0.0
    %v249 = vadd.f32 %v167, %v248
    %v250 = vld [vmem:[#allocation10] sm:$0xff]
    %v251 = vlaneseq
    %v252 = vshrl.u32 %v251, 7
    %v253 = vsub.s32 2, %v252
    %v254 = vrot.slane %v82, %v253
    %v256 = vsel %vm174, %v249, 0
    %258 = vmatprep.subr.mxu0 0.0
    %259 = vmatpush1.msra.mxu0 0.0
    %260 = vmatprep.subr.mxu0 0.0
    %261 = vmatpush1.msra.mxu0 0.0
    %262 = vmatprep.subr.mxu0 0.0
    %263 = vmatpush1.msra.mxu0 0.0
    %264 = vmatprep.subr.mxu0 0.0
    %265 = vmatpush1.msra.mxu0 0.0
    %266 = vmatprep.subr.mxu0 0.0
    %267 = vmatpush1.msra.mxu0 0.0
    %268 = vmatprep.subr.mxu0 0.0
    %269 = vmatpush1.msra.mxu0 0.0
    %270 = vmatprep.subr.mxu0 0.0
    %271 = vmatpush1.msra.mxu0 0.0
    %272 = vmatprep.subr.mxu0 0.0
    %273 = vmatpush1.msra.mxu0 0.0
    %274 = vmatprep.subr.mxu0 0.0
    %275 = vmatpush1.msra.mxu0 0.0
    %276 = vmatprep.subr.mxu0 0.0
    %277 = vmatpush1.msra.mxu0 0.0
    %278 = vmatprep.subr.mxu0 0.0
    %279 = vmatpush1.msra.mxu0 0.0
    %280 = vmatprep.subr.mxu0 0.0
    %281 = vmatpush1.msra.mxu0 0.0
    %282 = vmatprep.subr.mxu0 0.0
    %283 = vmatpush1.msra.mxu0 0.0
    %284 = vmatprep.subr.mxu0 0.0
    %285 = vmatpush1.msra.mxu0 0.0
    %286 = vmatprep.subr.mxu0 0.0
    %287 = vmatpush1.msra.mxu0 0.0
    %288 = vmatprep.subr.mxu0 0.0
    %289 = vmatpush1.msra.mxu0 %v250
    %290 = vmatprep.subr.mxu0 0.0
    %291 = vmatpush2.msra.mxu0 0.0
    %292 = vmatprep.subr.mxu0 0.0
    %293 = vmatpush2.msra.mxu0 0.0
    %294 = vmatprep.subr.mxu0 0.0
    %295 = vmatpush2.msra.mxu0 0.0
    %296 = vmatprep.subr.mxu0 0.0
    %297 = vmatpush2.msra.mxu0 0.0
    %298 = vmatprep.subr.mxu0 0.0
    %299 = vmatpush2.msra.mxu0 0.0
    %300 = vmatprep.subr.mxu0 0.0
    %301 = vmatpush2.msra.mxu0 0.0
    %302 = vmatprep.subr.mxu0 0.0
    %303 = vmatpush2.msra.mxu0 0.0
    %304 = vmatprep.subr.mxu0 0.0
    %305 = vmatpush2.msra.mxu0 0.0
    %306 = vmatprep.subr.mxu0 0.0
    %307 = vmatpush2.msra.mxu0 0.0
    %308 = vmatprep.subr.mxu0 0.0
    %309 = vmatpush2.msra.mxu0 0.0
    %310 = vmatprep.subr.mxu0 0.0
    %311 = vmatpush2.msra.mxu0 0.0
    %312 = vmatprep.subr.mxu0 0.0
    %313 = vmatpush2.msra.mxu0 0.0
    %314 = vmatprep.subr.mxu0 0.0
    %315 = vmatpush2.msra.mxu0 0.0
    %316 = vmatprep.subr.mxu0 0.0
    %317 = vmatpush2.msra.mxu0 0.0
    %318 = vmatprep.subr.mxu0 0.0
    %319 = vmatpush2.msra.mxu0 0.0
    %320 = vmatprep.subr.mxu0 0.0
    %321 = vmatpush2.msra.mxu0 0.0
    %322 = vmatprep.mubr.f32.mxu0 0.0
    %323 = vmatmul.mubr.f32.gmra.mxu0 %v256
    %v324 = vpop.f32.mrf.mxu0
    %v325 = vadd.f32 %v254, %v324
    %v326 = vpop.f32.mrf.mxu0
    %327 = vdwg.mxu0
    %vm328 = vcmask 58368
    %v329 = vsel %vm328, %v325, -inf
    %330 = vmax.xlane.f32.xlu0 %v329
    %v331 = vpop.xlane.xlu0 %330
    %v332 = vsub.f32 %v325, %v331
    %v333 = vmul.f32 %v332, 1.442695
    %v334 = vpow.pop %v333
    %v335 = vsel %vm328, %v334, 0.0
    %336 = vadd.xlane.f32.xlu0 %v335
    %v337 = vpop.xlane.xlu0 %336
    %v338 = vrcp.pop %v337
    %v339 = vmul.f32 %v334, %v338
    %340 = vst.msk [vmem:[#allocation11] sm:$0x3] %vm328, %v339
    // Predicated region
    $region46: #{tpu_custom_call.1} parent=1 // pred_check
      _
    $region47: #{tpu_custom_call.1} parent=1 // pred_check_branch
      %342 = sbr.rel (0) target = $region49
    $region48: #{tpu_custom_call.1} parent=1 // pred_region
      %s344 = ssub.s32 32, 32
      %345 = vsyncadd [#allocation4], %s344
      %s347 = sshll.u32 [#allocation11], 4
      %s348 = int_to_ptr.vmem [resolvable:$true] %s347
      %350 = dma.vmem_to_hbm [thread:$0]  %s348, 32, %s6, [#allocation4]
    $region49: #{tpu_custom_call.1} parent=1 // pred_fallthru
      _
    // Predicated region
    $region50: #{tpu_custom_call.1} parent=1 // pred_check
      _
    $region51: #{tpu_custom_call.1} parent=1 // pred_check_branch
      %352 = sbr.rel (0) target = $region53
    $region52: #{tpu_custom_call.1} parent=1 // pred_region
      %353 = dma.done [#allocation4], 32
    $region53: #{tpu_custom_call.1} parent=1 // pred_fallthru
      _
    %354 = vsyncpa [#allocation3], 1
    %355 = vsyncpa [#allocation6], 1
    %356 = vsyncpa [#allocation9], 1
    %357 = vsyncpa [#allocation4], 1

</llo_original>
